<compile_context>
chip_gen: v6e
topology: v6e:2x2x1
jax: 0.10.0
libtpu: 0.0.40
codegen_flags: <defaults>
</compile_context>

<pallas_src>
import jax
import jax.numpy as jnp
from jax.experimental import pallas as pl
from jax.experimental.pallas import tpu as pltpu


def critic_mlp_kernel(x_ref, w1_ref, b1_ref, w2_ref, b2_ref, w3_ref, b3_ref, o_ref):
    x = x_ref[...]                                                      # [S, TB] f32

    h1 = jnp.dot(w1_ref[...], x, preferred_element_type=jnp.float32) + b1_ref[...]
    h1 = jnp.maximum(h1, 0.0)                                           # [H, TB]

    h2 = jnp.dot(w2_ref[...], h1, preferred_element_type=jnp.float32) + b2_ref[...]
    h2 = jnp.maximum(h2, 0.0)                                           # [H, TB]

    # Value head (out_features = 1): an N/M=1 matmul wastes a full MXU push,
    # so use a VPU multiply + cross-sublane (XLU) reduction; b3 is an SMEM scalar.
    out = jnp.sum(h2 * w3_ref[...], axis=0, keepdims=True) + b3_ref[0, 0]
    o_ref[...] = out.astype(o_ref.dtype)                                # [1, TB] lane-dense


def critic_forward(x, params, *, block_b=1024):
    """x: [B, n_states] float32.

    params (PyTorch-native layout, biases/head weight as columns):
      w1 [H, S], b1 [H, 1], w2 [H, H], b2 [H, 1], w3 [H, 1], b3 [1, 1]

    Returns [B, 1] float32, same semantics as Critic.forward.
    """
    w1, b1 = params["w1"], params["b1"]
    w2, b2 = params["w2"], params["b2"]
    w3, b3 = params["w3"], params["b3"]
    B, n_states = x.shape

    # Layout plumbing only: present a lane-dense [n_states, B] slab to the kernel.
    x_t = x.T

    if B > block_b:
        tb = block_b                       # multiple of 128 -> lane-aligned tiles
        num_blocks = pl.cdiv(B, tb)
        b_pad = num_blocks * tb
        if b_pad != B:
            x_t = jnp.pad(x_t, ((0, 0), (0, b_pad - B)))
    else:
        tb = B                             # single full-extent block (small batch)
        num_blocks = 1
        b_pad = B

    const = lambda i: (0, 0)               # weights/biases resident across the grid

    out = pl.pallas_call(
        critic_mlp_kernel,
        out_shape=jax.ShapeDtypeStruct((1, b_pad), jnp.float32),
        grid=(num_blocks,),
        in_specs=[
            pl.BlockSpec((n_states, tb), lambda i: (0, i)),   # x: tiled over batch (lanes)
            pl.BlockSpec(w1.shape, const),
            pl.BlockSpec(b1.shape, const),
            pl.BlockSpec(w2.shape, const),
            pl.BlockSpec(b2.shape, const),
            pl.BlockSpec(w3.shape, const),
            pl.BlockSpec(memory_space=pltpu.MemorySpace.SMEM),  # b3 scalar -> SMEM
        ],
        out_specs=pl.BlockSpec((1, tb), lambda i: (0, i)),
        compiler_params=pltpu.CompilerParams(
            # Batch axis is independent -> shard across the 2 TensorCores on v7x.
            dimension_semantics=("parallel",),
        ),
    )(x_t, w1, b1, w2, b2, w3, b3)

    return out[:, :B].T                    # back to PyTorch's [B, 1]


def init_params(key, n_states, n_hiddens):
    # Deterministic synthetic init (PyTorch-like uniform ranges).
    k1, k2, k3, k4, k5, k6 = jax.random.split(key, 6)

    def uniform(k, shape, fan_in):
        bound = 1.0 / jnp.sqrt(fan_in)
        return jax.random.uniform(k, shape, jnp.float32, -bound, bound)

    return {
        "w1": uniform(k1, (n_hiddens, n_states), n_states),     # fc1.weight  [H, S]
        "b1": uniform(k2, (n_hiddens, 1), n_states),             # fc1.bias    [H, 1]
        "w2": uniform(k3, (n_hiddens, n_hiddens), n_hiddens),    # fc2.weight  [H, H]
        "b2": uniform(k4, (n_hiddens, 1), n_hiddens),             # fc2.bias    [H, 1]
        "w3": uniform(k5, (n_hiddens, 1), n_hiddens),             # fc3.weight^T [H, 1]
        "b3": uniform(k6, (1, 1), n_hiddens),                     # fc3.bias    [1, 1]
    }


def critic_reference(x, p):
    h1 = jnp.maximum(x @ p["w1"].T + p["b1"].T, 0.0)
    h2 = jnp.maximum(h1 @ p["w2"].T + p["b2"].T, 0.0)
    return h2 @ p["w3"] + p["b3"]


if __name__ == "__main__":
    n_states, n_actions, n_hiddens = 4, 2, 32
    batch = 8

    key = jax.random.PRNGKey(0)
    kx, kp, kx2 = jax.random.split(key, 3)
    x = jax.random.normal(kx, (batch, n_states), dtype=jnp.float32)
    params = init_params(kp, n_states, n_hiddens)

    out = jax.block_until_ready(critic_forward(x, params))
    ref = critic_reference(x, params)
    assert out.shape == (batch, 1), out.shape
    assert jnp.allclose(out, ref, atol=1e-5, rtol=1e-5), "mismatch vs reference (small batch)"

    # Exercise the tiled / padded grid path (grid over batch, weights resident).
    x_big = jax.random.normal(kx2, (300, n_states), dtype=jnp.float32)
    out_big = jax.block_until_ready(critic_forward(x_big, params, block_b=128))
    ref_big = critic_reference(x_big, params)
    assert out_big.shape == (300, 1), out_big.shape
    assert jnp.allclose(out_big, ref_big, atol=1e-5, rtol=1e-5), "mismatch vs reference (tiled batch)"

    print("KERNEL_OK")
</pallas_src>

<mosaic_0001>
module attributes {stable_mosaic.version = 11 : i64} {
  func.func @critic_mlp_kernel(%arg0: i32, %arg1: memref<4x8xf32, #tpu.memory_space<vmem>>, %arg2: memref<32x4xf32, #tpu.memory_space<vmem>>, %arg3: memref<32x1xf32, #tpu.memory_space<vmem>>, %arg4: memref<32x32xf32, #tpu.memory_space<vmem>>, %arg5: memref<32x1xf32, #tpu.memory_space<vmem>>, %arg6: memref<32x1xf32, #tpu.memory_space<vmem>>, %arg7: memref<1x1xf32, #tpu.memory_space<smem>>, %arg8: memref<1x8xf32, #tpu.memory_space<vmem>>) attributes {dimension_semantics = [#tpu.dimension_semantics<parallel>], iteration_bounds = array<i64: 1>, scalar_prefetch = 0 : i64, scratch_operands = 0 : i64, tpu.core_type = #tpu.core_type<tc>, window_params = [{transform_indices = @transform_0, window_bounds = array<i64: 4, 8>}, {pipeline_mode = #tpu.pipeline_mode<synchronous>, transform_indices = @transform_1, window_bounds = array<i64: 32, 4>}, {pipeline_mode = #tpu.pipeline_mode<synchronous>, transform_indices = @transform_2, window_bounds = array<i64: 32, 1>}, {pipeline_mode = #tpu.pipeline_mode<synchronous>, transform_indices = @transform_3, window_bounds = array<i64: 32, 32>}, {pipeline_mode = #tpu.pipeline_mode<synchronous>, transform_indices = @transform_4, window_bounds = array<i64: 32, 1>}, {pipeline_mode = #tpu.pipeline_mode<synchronous>, transform_indices = @transform_5, window_bounds = array<i64: 32, 1>}, {transform_indices = @transform_6, window_bounds = array<i64: 1, 1>}, {transform_indices = @transform_7, window_bounds = array<i64: 1, 8>}]} {
    %c0 = arith.constant 0 : index
    %c0_0 = arith.constant 0 : index
    %0 = vector.load %arg1[%c0, %c0_0] : memref<4x8xf32, #tpu.memory_space<vmem>>, vector<4x8xf32>
    %c0_1 = arith.constant 0 : index
    %c0_2 = arith.constant 0 : index
    %1 = vector.load %arg2[%c0_1, %c0_2] : memref<32x4xf32, #tpu.memory_space<vmem>>, vector<32x4xf32>
    %cst = arith.constant dense<0.000000e+00> : vector<32x8xf32>
    %2 = tpu.matmul %1, %0, %cst {dimension_numbers = #tpu.dot_dimension_numbers<[1], [0], [0], [1], [0, 0, 1, 1], [], []>} : vector<32x4xf32>, vector<4x8xf32>, vector<32x8xf32> -> vector<32x8xf32>
    %c0_3 = arith.constant 0 : index
    %c0_4 = arith.constant 0 : index
    %3 = vector.load %arg3[%c0_3, %c0_4] : memref<32x1xf32, #tpu.memory_space<vmem>>, vector<32x1xf32>
    %4 = vector.broadcast %3 : vector<32x1xf32> to vector<32x8xf32>
    %5 = arith.addf %2, %4 : vector<32x8xf32>
    %cst_5 = arith.constant 0.000000e+00 : f32
    %6 = vector.broadcast %cst_5 : f32 to vector<32x8xf32>
    %7 = arith.maximumf %5, %6 : vector<32x8xf32>
    %c0_6 = arith.constant 0 : index
    %c0_7 = arith.constant 0 : index
    %8 = vector.load %arg4[%c0_6, %c0_7] : memref<32x32xf32, #tpu.memory_space<vmem>>, vector<32x32xf32>
    %cst_8 = arith.constant dense<0.000000e+00> : vector<32x8xf32>
    %9 = tpu.matmul %8, %7, %cst_8 {dimension_numbers = #tpu.dot_dimension_numbers<[1], [0], [0], [1], [0, 0, 1, 1], [], []>} : vector<32x32xf32>, vector<32x8xf32>, vector<32x8xf32> -> vector<32x8xf32>
    %c0_9 = arith.constant 0 : index
    %c0_10 = arith.constant 0 : index
    %10 = vector.load %arg5[%c0_9, %c0_10] : memref<32x1xf32, #tpu.memory_space<vmem>>, vector<32x1xf32>
    %11 = vector.broadcast %10 : vector<32x1xf32> to vector<32x8xf32>
    %12 = arith.addf %9, %11 : vector<32x8xf32>
    %cst_11 = arith.constant 0.000000e+00 : f32
    %13 = vector.broadcast %cst_11 : f32 to vector<32x8xf32>
    %14 = arith.maximumf %12, %13 : vector<32x8xf32>
    %c0_12 = arith.constant 0 : index
    %c0_13 = arith.constant 0 : index
    %15 = vector.load %arg6[%c0_12, %c0_13] : memref<32x1xf32, #tpu.memory_space<vmem>>, vector<32x1xf32>
    %16 = vector.broadcast %15 : vector<32x1xf32> to vector<32x8xf32>
    %17 = arith.mulf %14, %16 : vector<32x8xf32>
    %cst_14 = arith.constant dense<0.000000e+00> : vector<8xf32>
    %18 = vector.multi_reduction <add>, %17, %cst_14 [0] : vector<32x8xf32> to vector<8xf32>
    %19 = vector.shape_cast %18 : vector<8xf32> to vector<1x8xf32>
    %c0_15 = arith.constant 0 : index
    %c0_16 = arith.constant 0 : index
    %20 = memref.load %arg7[%c0_15, %c0_16] : memref<1x1xf32, #tpu.memory_space<smem>>
    %21 = vector.broadcast %20 : f32 to vector<1x8xf32>
    %22 = arith.addf %19, %21 : vector<1x8xf32>
    %c0_17 = arith.constant 0 : index
    %c0_18 = arith.constant 0 : index
    %23 = vector.load %arg8[%c0_17, %c0_18] : memref<1x8xf32, #tpu.memory_space<vmem>>, vector<1x8xf32>
    tpu.vector_store %arg8[%c0_17, %c0_18], %22 {strides = array<i32>} : memref<1x8xf32, #tpu.memory_space<vmem>>, vector<1x8xf32>,
    return
  }
  func.func @transform_0(%arg0: i32) -> (i32, i32) {
    %c0_i32 = arith.constant 0 : i32
    %c0_i32_0 = arith.constant 0 : i32
    return %c0_i32, %arg0 : i32, i32
  }
  func.func @transform_1(%arg0: i32) -> (i32, i32) {
    %c0_i32 = arith.constant 0 : i32
    %c0_i32_0 = arith.constant 0 : i32
    %c0_i32_1 = arith.constant 0 : i32
    return %c0_i32, %c0_i32_0 : i32, i32
  }
  func.func @transform_2(%arg0: i32) -> (i32, i32) {
    %c0_i32 = arith.constant 0 : i32
    %c0_i32_0 = arith.constant 0 : i32
    %c0_i32_1 = arith.constant 0 : i32
    return %c0_i32, %c0_i32_0 : i32, i32
  }
  func.func @transform_3(%arg0: i32) -> (i32, i32) {
    %c0_i32 = arith.constant 0 : i32
    %c0_i32_0 = arith.constant 0 : i32
    %c0_i32_1 = arith.constant 0 : i32
    return %c0_i32, %c0_i32_0 : i32, i32
  }
  func.func @transform_4(%arg0: i32) -> (i32, i32) {
    %c0_i32 = arith.constant 0 : i32
    %c0_i32_0 = arith.constant 0 : i32
    %c0_i32_1 = arith.constant 0 : i32
    return %c0_i32, %c0_i32_0 : i32, i32
  }
  func.func @transform_5(%arg0: i32) -> (i32, i32) {
    %c0_i32 = arith.constant 0 : i32
    %c0_i32_0 = arith.constant 0 : i32
    %c0_i32_1 = arith.constant 0 : i32
    return %c0_i32, %c0_i32_0 : i32, i32
  }
  func.func @transform_6(%arg0: i32) -> (i32, i32) {
    %c0_i32 = arith.constant 0 : i32
    %c0_i32_0 = arith.constant 0 : i32
    %c0_i32_1 = arith.constant 0 : i32
    return %c0_i32, %c0_i32_0 : i32, i32
  }
  func.func @transform_7(%arg0: i32) -> (i32, i32) {
    %c0_i32 = arith.constant 0 : i32
    %c0_i32_0 = arith.constant 0 : i32
    return %c0_i32, %arg0 : i32, i32
  }
}

</mosaic_0001>

<llo_original>
// kernel: tpu_custom_call.1
$region0: #{tpu_custom_call.1}
  #allocation0 [shape = 'u32[]', space=smem, size = 0x4, offset = 0x4, fixed_abs, tag = 'smem constant byte address 0x4 - core index']
  #allocation1 [shape = 'u32[144,128]{1,0:T(1,128)}', space=vmem, size = 0x12000, scoped, tag = 'internal scratch']
  #allocation2 [shape = 'f32[1,1]{1,0:T(1,128)S(6)}', space=smem, size = 0x200, scoped, tag = 'scoped memory for tpu_custom_call.1']
  %s0 = inlined_call_operand.vmem [shape: f32[4,8], index: 0, kind: input, shape index: {}]
  %s1 = inlined_call_operand.vmem [shape: f32[32,4], index: 1, kind: input, shape index: {}]
  %s2 = inlined_call_operand.vmem [shape: f32[32,1], index: 2, kind: input, shape index: {}]
  %s3 = inlined_call_operand.vmem [shape: f32[32,32], index: 3, kind: input, shape index: {}]
  %s4 = inlined_call_operand.vmem [shape: f32[32,1], index: 4, kind: input, shape index: {}]
  %s5 = inlined_call_operand.vmem [shape: f32[32,1], index: 5, kind: input, shape index: {}]
  %s6 = inlined_call_operand.<no memory space> [shape: f32[1,1], index: 6, kind: input, shape index: {}]
  %s7 = inlined_call_operand.hbm [shape: f32[1,8], index: 7, kind: output, shape index: {}]
  %s8 = sld [smem:[#allocation0]]
  $region38: #{tpu_custom_call.1} parent=0
    _
  %s10 = ssub.s32 1, %s8
  %s11 = scalar_select 0, %s10, %s8
  %12 = sst [smem:[#allocation2]] %s6
  $region1: #{tpu_custom_call.1} parent=0
    #allocation3 [shape = 'u8[512]{0}', space=vmem, size = 0x400, scoped, tag = 'output window, operand 0, single buffered']
    #allocation4 [shape = 's32[1]{0}', space=sflag, size = 0x4, scoped, tag = 'scoped memory for tpu_custom_call.1']
    %13 = vsyncpa [#allocation4], 0
    // Predicated region
    $region2: #{tpu_custom_call.1} parent=1 // pred_check
      _
    $region3: #{tpu_custom_call.1} parent=1 // pred_check_branch
      %15 = sbr.rel (0) target = $region5
    $region4: #{tpu_custom_call.1} parent=1 // pred_region
      _
    $region5: #{tpu_custom_call.1} parent=1 // pred_fallthru
      _
    // Predicated region
    $region6: #{tpu_custom_call.1} parent=1 // pred_check
      _
    $region7: #{tpu_custom_call.1} parent=1 // pred_check_branch
      %17 = sbr.rel (0) target = $region9
    $region8: #{tpu_custom_call.1} parent=1 // pred_region
      _
    $region9: #{tpu_custom_call.1} parent=1 // pred_fallthru
      _
    // Predicated region
    $region10: #{tpu_custom_call.1} parent=1 // pred_check
      _
    $region11: #{tpu_custom_call.1} parent=1 // pred_check_branch
      %19 = sbr.rel (0) target = $region13
    $region12: #{tpu_custom_call.1} parent=1 // pred_region
      _
    $region13: #{tpu_custom_call.1} parent=1 // pred_fallthru
      _
    // Predicated region
    $region14: #{tpu_custom_call.1} parent=1 // pred_check
      _
    $region15: #{tpu_custom_call.1} parent=1 // pred_check_branch
      %21 = sbr.rel (0) target = $region17
    $region16: #{tpu_custom_call.1} parent=1 // pred_region
      _
    $region17: #{tpu_custom_call.1} parent=1 // pred_fallthru
      _
    // Predicated region
    $region18: #{tpu_custom_call.1} parent=1 // pred_check
      _
    $region19: #{tpu_custom_call.1} parent=1 // pred_check_branch
      %23 = sbr.rel (0) target = $region21
    $region20: #{tpu_custom_call.1} parent=1 // pred_region
      _
    $region21: #{tpu_custom_call.1} parent=1 // pred_fallthru
      _
    // Predicated region
    $region22: #{tpu_custom_call.1} parent=1 // pred_check
      _
    $region23: #{tpu_custom_call.1} parent=1 // pred_check_branch
      %25 = sbr.rel (0) target = $region25
    $region24: #{tpu_custom_call.1} parent=1 // pred_region
      _
    $region25: #{tpu_custom_call.1} parent=1 // pred_fallthru
      _
    // Predicated region
    $region26: #{tpu_custom_call.1} parent=1 // pred_check
      _
    $region27: #{tpu_custom_call.1} parent=1 // pred_check_branch
      %27 = sbr.rel (0) target = $region29
    $region28: #{tpu_custom_call.1} parent=1 // pred_region
      _
    $region29: #{tpu_custom_call.1} parent=1 // pred_fallthru
      _
    %v28 = vld [vmem:[%s0] sm:$0xf]
    %v29 = vld [vmem:[%s1] sm:$0xff]
    %v30 = vld [vmem:[%s1 + $0x8] sm:$0xff]
    %v31 = vld [vmem:[%s1 + $0x10] sm:$0xff]
    %v32 = vld [vmem:[%s1 + $0x18] sm:$0xff]
    %v33 = vld [vmem:[%s2] sm:$0xff]
    %v34 = vld [vmem:[%s2 + $0x8] sm:$0xff]
    %v35 = vld [vmem:[%s2 + $0x10] sm:$0xff]
    %v36 = vld [vmem:[%s2 + $0x18] sm:$0xff]
    %38 = vset.pattern.permute.xlu0 0
    %39 = vperm.xlu0 %38, %v33
    %v40 = vpop.permute.xlu0 %39
    %43 = vset.pattern.permute.xlu0 0
    %44 = vperm.xlu0 %43, %v34
    %v45 = vpop.permute.xlu0 %44
    %48 = vset.pattern.permute.xlu0 0
    %49 = vperm.xlu0 %48, %v35
    %v50 = vpop.permute.xlu0 %49
    %53 = vset.pattern.permute.xlu0 0
    %54 = vperm.xlu0 %53, %v36
    %v55 = vpop.permute.xlu0 %54
    %vm57 = vcmask 31744
    %v59 = vsel %vm57, %v29, 0
    %v62 = vsel %vm57, %v30, 0
    %v65 = vsel %vm57, %v31, 0
    %v68 = vsel %vm57, %v32, 0
    %vm70 = vcmask 1043456
    %v72 = vsel %vm70, %v28, 0
    %74 = vmatprep.subr.mxu0 0.0
    %75 = vmatpush1.msra.mxu0 0.0
    %76 = vmatprep.subr.mxu0 0.0
    %77 = vmatpush1.msra.mxu0 0.0
    %78 = vmatprep.subr.mxu0 0.0
    %79 = vmatpush1.msra.mxu0 0.0
    %80 = vmatprep.subr.mxu0 0.0
    %81 = vmatpush1.msra.mxu0 0.0
    %82 = vmatprep.subr.mxu0 0.0
    %83 = vmatpush1.msra.mxu0 0.0
    %84 = vmatprep.subr.mxu0 0.0
    %85 = vmatpush1.msra.mxu0 0.0
    %86 = vmatprep.subr.mxu0 0.0
    %87 = vmatpush1.msra.mxu0 0.0
    %88 = vmatprep.subr.mxu0 0.0
    %89 = vmatpush1.msra.mxu0 0.0
    %90 = vmatprep.subr.mxu0 0.0
    %91 = vmatpush1.msra.mxu0 0.0
    %92 = vmatprep.subr.mxu0 0.0
    %93 = vmatpush1.msra.mxu0 0.0
    %94 = vmatprep.subr.mxu0 0.0
    %95 = vmatpush1.msra.mxu0 0.0
    %96 = vmatprep.subr.mxu0 0.0
    %97 = vmatpush1.msra.mxu0 0.0
    %98 = vmatprep.subr.mxu0 0.0
    %99 = vmatpush1.msra.mxu0 0.0
    %100 = vmatprep.subr.mxu0 0.0
    %101 = vmatpush1.msra.mxu0 0.0
    %102 = vmatprep.subr.mxu0 0.0
    %103 = vmatpush1.msra.mxu0 0.0
    %104 = vmatprep.subr.mxu0 0.0
    %105 = vmatpush1.msra.mxu0 %v72
    %106 = vmatprep.subr.mxu0 0.0
    %107 = vmatpush2.msra.mxu0 0.0
    %108 = vmatprep.subr.mxu0 0.0
    %109 = vmatpush2.msra.mxu0 0.0
    %110 = vmatprep.subr.mxu0 0.0
    %111 = vmatpush2.msra.mxu0 0.0
    %112 = vmatprep.subr.mxu0 0.0
    %113 = vmatpush2.msra.mxu0 0.0
    %114 = vmatprep.subr.mxu0 0.0
    %115 = vmatpush2.msra.mxu0 0.0
    %116 = vmatprep.subr.mxu0 0.0
    %117 = vmatpush2.msra.mxu0 0.0
    %118 = vmatprep.subr.mxu0 0.0
    %119 = vmatpush2.msra.mxu0 0.0
    %120 = vmatprep.subr.mxu0 0.0
    %121 = vmatpush2.msra.mxu0 0.0
    %122 = vmatprep.subr.mxu0 0.0
    %123 = vmatpush2.msra.mxu0 0.0
    %124 = vmatprep.subr.mxu0 0.0
    %125 = vmatpush2.msra.mxu0 0.0
    %126 = vmatprep.subr.mxu0 0.0
    %127 = vmatpush2.msra.mxu0 0.0
    %128 = vmatprep.subr.mxu0 0.0
    %129 = vmatpush2.msra.mxu0 0.0
    %130 = vmatprep.subr.mxu0 0.0
    %131 = vmatpush2.msra.mxu0 0.0
    %132 = vmatprep.subr.mxu0 0.0
    %133 = vmatpush2.msra.mxu0 0.0
    %134 = vmatprep.subr.mxu0 0.0
    %135 = vmatpush2.msra.mxu0 0.0
    %136 = vmatprep.subr.mxu0 0.0
    %137 = vmatpush2.msra.mxu0 0.0
    %138 = vmatprep.mubr.f32.mxu0 0.0
    %139 = vmatmul.mubr.f32.gmra.mxu0 %v59
    %v140 = vpop.f32.mrf.mxu0
    %v141 = vadd.f32 %v40, %v140
    %v142 = vpop.f32.mrf.mxu0
    %143 = vmatprep.mubr.f32.mxu0 0.0
    %144 = vmatmul.mubr.f32.gmra.mxu0 %v62
    %v145 = vpop.f32.mrf.mxu0
    %v146 = vadd.f32 %v45, %v145
    %v147 = vpop.f32.mrf.mxu0
    %148 = vmatprep.mubr.f32.mxu0 0.0
    %149 = vmatmul.mubr.f32.gmra.mxu0 %v65
    %v150 = vpop.f32.mrf.mxu0
    %v151 = vadd.f32 %v50, %v150
    %v152 = vpop.f32.mrf.mxu0
    %153 = vmatprep.mubr.f32.mxu0 0.0
    %154 = vmatmul.mubr.f32.gmra.mxu0 %v68
    %v155 = vpop.f32.mrf.mxu0
    %v156 = vadd.f32 %v55, %v155
    %v157 = vpop.f32.mrf.mxu0
    %158 = vdwg.mxu0
    %v159 = vmax.f32 %v141, 0.0
    %v160 = vmax.f32 %v146, 0.0
    %v161 = vmax.f32 %v151, 0.0
    %v162 = vmax.f32 %v156, 0.0
    %v163 = vld [vmem:[%s3] sm:$0xff]
    %v164 = vld [vmem:[%s3 + $0x8] sm:$0xff]
    %v165 = vld [vmem:[%s3 + $0x10] sm:$0xff]
    %v166 = vld [vmem:[%s3 + $0x18] sm:$0xff]
    %v167 = vld [vmem:[%s4] sm:$0xff]
    %v168 = vld [vmem:[%s4 + $0x8] sm:$0xff]
    %v169 = vld [vmem:[%s4 + $0x10] sm:$0xff]
    %v170 = vld [vmem:[%s4 + $0x18] sm:$0xff]
    %172 = vset.pattern.permute.xlu0 0
    %173 = vperm.xlu0 %172, %v167
    %v174 = vpop.permute.xlu0 %173
    %177 = vset.pattern.permute.xlu0 0
    %178 = vperm.xlu0 %177, %v168
    %v179 = vpop.permute.xlu0 %178
    %182 = vset.pattern.permute.xlu0 0
    %183 = vperm.xlu0 %182, %v169
    %v184 = vpop.permute.xlu0 %183
    %187 = vset.pattern.permute.xlu0 0
    %188 = vperm.xlu0 %187, %v170
    %v189 = vpop.permute.xlu0 %188
    %vm191 = vcmask 261120
    %v193 = vsel %vm191, %v163, 0
    %v196 = vsel %vm191, %v164, 0
    %v199 = vsel %vm191, %v165, 0
    %v202 = vsel %vm191, %v166, 0
    %204 = vmatprep.subr.mxu0 0.0
    %205 = vmatpush1.msra.mxu0 0.0
    %206 = vmatprep.subr.mxu0 0.0
    %207 = vmatpush1.msra.mxu0 0.0
    %208 = vmatprep.subr.mxu0 0.0
    %209 = vmatpush1.msra.mxu0 0.0
    %210 = vmatprep.subr.mxu0 0.0
    %211 = vmatpush1.msra.mxu0 0.0
    %212 = vmatprep.subr.mxu0 0.0
    %213 = vmatpush1.msra.mxu0 0.0
    %214 = vmatprep.subr.mxu0 0.0
    %215 = vmatpush1.msra.mxu0 0.0
    %216 = vmatprep.subr.mxu0 0.0
    %217 = vmatpush1.msra.mxu0 0.0
    %218 = vmatprep.subr.mxu0 0.0
    %219 = vmatpush1.msra.mxu0 0.0
    %220 = vmatprep.subr.mxu0 0.0
    %221 = vmatpush1.msra.mxu0 0.0
    %222 = vmatprep.subr.mxu0 0.0
    %223 = vmatpush1.msra.mxu0 0.0
    %224 = vmatprep.subr.mxu0 0.0
    %225 = vmatpush1.msra.mxu0 0.0
    %226 = vmatprep.subr.mxu0 0.0
    %227 = vmatpush1.msra.mxu0 0.0
    %228 = vmatprep.subr.mxu0 0.0
    %229 = vmatpush1.msra.mxu0 %v162
    %230 = vmatprep.subr.mxu0 0.0
    %231 = vmatpush1.msra.mxu0 %v161
    %232 = vmatprep.subr.mxu0 0.0
    %233 = vmatpush1.msra.mxu0 %v160
    %234 = vmatprep.subr.mxu0 0.0
    %235 = vmatpush1.msra.mxu0 %v159
    %236 = vmatprep.subr.mxu0 0.0
    %237 = vmatpush2.msra.mxu0 0.0
    %238 = vmatprep.subr.mxu0 0.0
    %239 = vmatpush2.msra.mxu0 0.0
    %240 = vmatprep.subr.mxu0 0.0
    %241 = vmatpush2.msra.mxu0 0.0
    %242 = vmatprep.subr.mxu0 0.0
    %243 = vmatpush2.msra.mxu0 0.0
    %244 = vmatprep.subr.mxu0 0.0
    %245 = vmatpush2.msra.mxu0 0.0
    %246 = vmatprep.subr.mxu0 0.0
    %247 = vmatpush2.msra.mxu0 0.0
    %248 = vmatprep.subr.mxu0 0.0
    %249 = vmatpush2.msra.mxu0 0.0
    %250 = vmatprep.subr.mxu0 0.0
    %251 = vmatpush2.msra.mxu0 0.0
    %252 = vmatprep.subr.mxu0 0.0
    %253 = vmatpush2.msra.mxu0 0.0
    %254 = vmatprep.subr.mxu0 0.0
    %255 = vmatpush2.msra.mxu0 0.0
    %256 = vmatprep.subr.mxu0 0.0
    %257 = vmatpush2.msra.mxu0 0.0
    %258 = vmatprep.subr.mxu0 0.0
    %259 = vmatpush2.msra.mxu0 0.0
    %260 = vmatprep.subr.mxu0 0.0
    %261 = vmatpush2.msra.mxu0 0.0
    %262 = vmatprep.subr.mxu0 0.0
    %263 = vmatpush2.msra.mxu0 0.0
    %264 = vmatprep.subr.mxu0 0.0
    %265 = vmatpush2.msra.mxu0 0.0
    %266 = vmatprep.subr.mxu0 0.0
    %267 = vmatpush2.msra.mxu0 0.0
    %268 = vmatprep.mubr.f32.mxu0 0.0
    %269 = vmatmul.mubr.f32.gmra.mxu0 %v193
    %v270 = vpop.f32.mrf.mxu0
    %v271 = vadd.f32 %v174, %v270
    %v272 = vpop.f32.mrf.mxu0
    %273 = vmatprep.mubr.f32.mxu0 0.0
    %274 = vmatmul.mubr.f32.gmra.mxu0 %v196
    %v275 = vpop.f32.mrf.mxu0
    %v276 = vadd.f32 %v179, %v275
    %v277 = vpop.f32.mrf.mxu0
    %278 = vmatprep.mubr.f32.mxu0 0.0
    %279 = vmatmul.mubr.f32.gmra.mxu0 %v199
    %v280 = vpop.f32.mrf.mxu0
    %v281 = vadd.f32 %v184, %v280
    %v282 = vpop.f32.mrf.mxu0
    %283 = vmatprep.mubr.f32.mxu0 0.0
    %284 = vmatmul.mubr.f32.gmra.mxu0 %v202
    %v285 = vpop.f32.mrf.mxu0
    %v286 = vadd.f32 %v189, %v285
    %v287 = vpop.f32.mrf.mxu0
    %288 = vdwg.mxu0
    %v289 = vmax.f32 %v271, 0.0
    %v290 = vmax.f32 %v276, 0.0
    %v291 = vmax.f32 %v281, 0.0
    %v292 = vmax.f32 %v286, 0.0
    %v293 = vld [vmem:[%s5] sm:$0xff]
    %v294 = vld [vmem:[%s5 + $0x8] sm:$0xff]
    %v295 = vld [vmem:[%s5 + $0x10] sm:$0xff]
    %v296 = vld [vmem:[%s5 + $0x18] sm:$0xff]
    %298 = vset.pattern.permute.xlu0 0
    %299 = vperm.xlu0 %298, %v293
    %v300 = vpop.permute.xlu0 %299
    %303 = vset.pattern.permute.xlu0 0
    %304 = vperm.xlu0 %303, %v294
    %v305 = vpop.permute.xlu0 %304
    %308 = vset.pattern.permute.xlu0 0
    %309 = vperm.xlu0 %308, %v295
    %v310 = vpop.permute.xlu0 %309
    %313 = vset.pattern.permute.xlu0 0
    %314 = vperm.xlu0 %313, %v296
    %v315 = vpop.permute.xlu0 %314
    %v317 = vmul.f32 %v289, %v300
    %v318 = vmul.f32 %v290, %v305
    %v319 = vmul.f32 %v291, %v310
    %v320 = vmul.f32 %v292, %v315
    %vm321 = vcmask 64512
    %v322 = vsel %vm321, %v317, 0.0
    %v323 = vsel %vm321, %v318, 0.0
    %v324 = vadd.f32 %v322, %v323
    %v325 = vsel %vm321, %v319, 0.0
    %v326 = vadd.f32 %v324, %v325
    %v327 = vsel %vm321, %v320, 0.0
    %v328 = vadd.f32 %v326, %v327
    %v329 = vrot.slane %v328, 4
    %v330 = vadd.f32 %v328, %v329
    %v331 = vrot.slane %v330, 2
    %v332 = vadd.f32 %v330, %v331
    %v333 = vrot.slane %v332, 1
    %v334 = vadd.f32 %v332, %v333
    %s335 = sld [smem:[#allocation2]]
    %v336 = vstv %s335
    %v337 = vadd.f32 %v334, %v336
    %vm338 = vcmask 57344
    %339 = vst.msk [vmem:[#allocation3] sm:$0x1] %vm338, %v337
    // Predicated region
    $region30: #{tpu_custom_call.1} parent=1 // pred_check
      _
    $region31: #{tpu_custom_call.1} parent=1 // pred_check_branch
      %341 = sbr.rel (0) target = $region33
    $region32: #{tpu_custom_call.1} parent=1 // pred_region
      %s343 = ssub.s32 16, 16
      %344 = vsyncadd [#allocation4], %s343
      %s346 = sshll.u32 [#allocation3], 4
      %s347 = int_to_ptr.vmem [resolvable:$true] %s346
      %349 = dma.vmem_to_hbm [thread:$0]  %s347, 16, %s7, [#allocation4]
    $region33: #{tpu_custom_call.1} parent=1 // pred_fallthru
      _
    // Predicated region
    $region34: #{tpu_custom_call.1} parent=1 // pred_check
      _
    $region35: #{tpu_custom_call.1} parent=1 // pred_check_branch
      %351 = sbr.rel (0) target = $region37
    $region36: #{tpu_custom_call.1} parent=1 // pred_region
      %352 = dma.done [#allocation4], 16
    $region37: #{tpu_custom_call.1} parent=1 // pred_fallthru
      _
    %353 = vsyncpa [#allocation4], 1

</llo_original>
